<compile_context>
chip_gen: v7x
topology: tpu7x:2x2x1
jax: 0.10.0
libtpu: 0.0.40
codegen_flags: <defaults>
</compile_context>

<pallas_src>
import functools

import jax
import jax.numpy as jnp
import numpy as np
from jax.experimental import pallas as pl
from jax.experimental.pallas import tpu as pltpu


# --------------------------------------------------------------------------
# Kernel
# --------------------------------------------------------------------------
def mmtm_kernel(vis_ref, sk_ref,
                wsq_v_ref, wsq_s_ref, bsq_ref,
                w_gate_ref, b_gate_ref,
                vis_out_ref, sk_out_ref, *, cv, inv_hw, inv_l):
    # Per grid step (Bt batch elements):
    #   vis_ref: (Bt, Cv, HWp)   sk_ref: (Bt, Cs, L)

    # squeeze: mean over all dims after (batch, channel).  The visual block
    # may be zero-padded along the lane axis, so sum and scale by 1/HW_orig.
    sq_v = jnp.sum(vis_ref[...], axis=-1) * inv_hw      # (Bt, Cv)
    sq_s = jnp.sum(sk_ref[...], axis=-1) * inv_l         # (Bt, Cs)

    # fc_squeeze: concat([sq_v, sq_s], 1) @ Wsq^T + b
    #           == sq_v @ Wsq_v + sq_s @ Wsq_s + b   (weights pre-split)
    exc = (jnp.dot(sq_v, wsq_v_ref[...], preferred_element_type=jnp.float32)
           + jnp.dot(sq_s, wsq_s_ref[...], preferred_element_type=jnp.float32)
           + bsq_ref[...])                                # (Bt, dim_out)
    exc = jnp.maximum(exc, 0.0)                           # ReLU

    # fused fc_visual + fc_skeleton: one matmul, one sigmoid, then slice.
    gates = jax.nn.sigmoid(
        jnp.dot(exc, w_gate_ref[...], preferred_element_type=jnp.float32)
        + b_gate_ref[...])                                # (Bt, Cv + Cs)
    vis_gate = gates[:, :cv]                              # (Bt, Cv)
    sk_gate = gates[:, cv:]                               # (Bt, Cs)

    # Gated multiply: re-read the activation blocks from VMEM here (vld slots
    # have slack in this HBM-bound kernel) rather than holding them in vregs
    # across the FC region.
    vis_out_ref[...] = (vis_ref[...] * vis_gate[:, :, None]).astype(vis_out_ref.dtype)
    sk_out_ref[...] = (sk_ref[...] * sk_gate[:, :, None]).astype(sk_out_ref.dtype)


# --------------------------------------------------------------------------
# Wrapper
# --------------------------------------------------------------------------
def prepare_mmtm_params(params, dim_visual):
    """One-time weight preprocessing (hoisted out of the per-call path)."""
    wsq_t = params["fc_squeeze_w"].T                  # (Cv+Cs, dim_out)
    fused = {
        "wsq_v": wsq_t[:dim_visual, :],               # (Cv, dim_out)
        "wsq_s": wsq_t[dim_visual:, :],               # (Cs, dim_out)
        "bsq": params["fc_squeeze_b"][None, :],       # (1, dim_out)
        # Fuse the two gate projections into one matmul (visual cols first).
        "w_gate": jnp.concatenate(
            [params["fc_visual_w"].T, params["fc_skeleton_w"].T], axis=1),
        "b_gate": jnp.concatenate(
            [params["fc_visual_b"], params["fc_skeleton_b"]])[None, :],
    }
    return jax.tree_util.tree_map(jnp.asarray, fused)


def _pick_block_batch(batch, per_batch_bytes, target_bytes=2 << 20):
    """Largest divisor of `batch` whose visual block is <= ~target_bytes,
    while keeping >=2 grid steps (v7x megacore) when batch >= 2."""
    bt = max(1, min(batch, target_bytes // max(per_batch_bytes, 1)))
    if batch >= 2:
        bt = min(bt, batch // 2)
    bt = max(1, bt)
    while batch % bt:
        bt -= 1
    return bt


def mmtm_forward(visual, skeleton, fused_params):
    """visual: (B, Cv, H, W) float32; skeleton: (B, Cs, L...) float32.

    fused_params: output of prepare_mmtm_params().
    """
    B, Cv = visual.shape[:2]
    Cs = skeleton.shape[1]
    HW = int(np.prod(visual.shape[2:]))
    L = int(np.prod(skeleton.shape[2:]))

    # Lane-dense visual layout: pad flattened spatial dim to a 128-multiple.
    HWp = ((HW + 127) // 128) * 128
    vis_flat = visual.reshape(B, Cv, HW)
    if HWp != HW:
        vis_flat = jnp.pad(vis_flat, ((0, 0), (0, 0), (0, HWp - HW)))
    sk_flat = skeleton.reshape(B, Cs, L)

    itemsize = jnp.dtype(visual.dtype).itemsize
    Bt = _pick_block_batch(B, Cv * HWp * itemsize)
    grid = (B // Bt,)

    wsq_v = fused_params["wsq_v"]
    wsq_s = fused_params["wsq_s"]
    bsq = fused_params["bsq"]
    w_gate = fused_params["w_gate"]
    b_gate = fused_params["b_gate"]
    dim_out = wsq_v.shape[1]

    def const2d(shape):
        return pl.BlockSpec(shape, lambda b: (0, 0))

    kernel = functools.partial(mmtm_kernel, cv=Cv,
                               inv_hw=float(1.0 / HW), inv_l=float(1.0 / L))

    vis_out, sk_out = pl.pallas_call(
        kernel,
        grid=grid,
        out_shape=(jax.ShapeDtypeStruct((B, Cv, HWp), visual.dtype),
                   jax.ShapeDtypeStruct((B, Cs, L), skeleton.dtype)),
        in_specs=[
            pl.BlockSpec((Bt, Cv, HWp), lambda b: (b, 0, 0)),  # visual block
            pl.BlockSpec((Bt, Cs, L), lambda b: (b, 0, 0)),    # skeleton block
            const2d((Cv, dim_out)),                            # Wsq (visual half)
            const2d((Cs, dim_out)),                            # Wsq (skeleton half)
            const2d((1, dim_out)),                             # b_squeeze
            const2d((dim_out, Cv + Cs)),                       # fused gate weight
            const2d((1, Cv + Cs)),                             # fused gate bias
        ],
        out_specs=(
            pl.BlockSpec((Bt, Cv, HWp), lambda b: (b, 0, 0)),
            pl.BlockSpec((Bt, Cs, L), lambda b: (b, 0, 0)),
        ),
        compiler_params=pltpu.CompilerParams(
            dimension_semantics=("parallel",),        # batch steps independent
            vmem_limit_bytes=48 * 1024 * 1024,        # budgeted for v7x (64 MiB phys)
        ),
    )(vis_flat, sk_flat, wsq_v, wsq_s, bsq, w_gate, b_gate)

    if HWp != HW:
        vis_out = vis_out[:, :, :HW]
    return vis_out.reshape(visual.shape), sk_out.reshape(skeleton.shape)


# --------------------------------------------------------------------------
# Pure-JAX reference + parameter construction
# --------------------------------------------------------------------------
def mmtm_reference(visual, skeleton, params):
    B, Cv = visual.shape[:2]
    Cs = skeleton.shape[1]
    sq_v = jnp.mean(visual.reshape(B, Cv, -1), axis=-1)
    sq_s = jnp.mean(skeleton.reshape(B, Cs, -1), axis=-1)
    squeeze = jnp.concatenate([sq_v, sq_s], axis=1)
    exc = squeeze @ params["fc_squeeze_w"].T + params["fc_squeeze_b"]
    exc = jnp.maximum(exc, 0.0)
    vg = jax.nn.sigmoid(exc @ params["fc_visual_w"].T + params["fc_visual_b"])
    sg = jax.nn.sigmoid(exc @ params["fc_skeleton_w"].T + params["fc_skeleton_b"])
    vis_out = visual * vg.reshape(vg.shape + (1,) * (visual.ndim - 2))
    sk_out = skeleton * sg.reshape(sg.shape + (1,) * (skeleton.ndim - 2))
    return vis_out, sk_out


def make_params(key, dim_visual, dim_skeleton, ratio):
    dim = dim_visual + dim_skeleton
    dim_out = int(2 * dim / ratio)
    ks = jax.random.split(key, 6)

    def lin(kw, kb, fan_in, fan_out):
        bound = 1.0 / np.sqrt(fan_in)
        w = jax.random.uniform(kw, (fan_out, fan_in), jnp.float32, -bound, bound)
        b = jax.random.uniform(kb, (fan_out,), jnp.float32, -bound, bound)
        return w, b

    wsq, bsq = lin(ks[0], ks[1], dim, dim_out)
    wv, bv = lin(ks[2], ks[3], dim_out, dim_visual)
    ws, bs = lin(ks[4], ks[5], dim_out, dim_skeleton)
    return {
        "fc_squeeze_w": wsq, "fc_squeeze_b": bsq,
        "fc_visual_w": wv, "fc_visual_b": bv,
        "fc_skeleton_w": ws, "fc_skeleton_b": bs,
    }


if __name__ == "__main__":
    B, Cv, H, W = 2, 8, 16, 16     # visual: NCHW
    Cs, L = 8, 32                  # skeleton: (B, C, L)
    ratio = 4

    key = jax.random.PRNGKey(0)
    k_vis, k_sk, k_par = jax.random.split(key, 3)
    visual = jax.random.normal(k_vis, (B, Cv, H, W), jnp.float32)
    skeleton = jax.random.normal(k_sk, (B, Cs, L), jnp.float32)
    params = make_params(k_par, Cv, Cs, ratio)

    fused_params = prepare_mmtm_params(params, Cv)   # one-time weight fusion
    fwd = jax.jit(mmtm_forward)
    vis_out, sk_out = fwd(visual, skeleton, fused_params)
    jax.block_until_ready((vis_out, sk_out))

    vis_ref, sk_ref = mmtm_reference(visual, skeleton, params)
    np.testing.assert_allclose(np.asarray(vis_out), np.asarray(vis_ref),
                               rtol=1e-5, atol=1e-5)
    np.testing.assert_allclose(np.asarray(sk_out), np.asarray(sk_ref),
                               rtol=1e-5, atol=1e-5)
    print("KERNEL_OK")
</pallas_src>

<mosaic_0001>
module attributes {stable_mosaic.version = 11 : i64} {
  func.func @mmtm_kernel(%arg0: i32, %arg1: memref<1x8x256xf32, #tpu.memory_space<vmem>>, %arg2: memref<1x8x32xf32, #tpu.memory_space<vmem>>, %arg3: memref<8x8xf32, #tpu.memory_space<vmem>>, %arg4: memref<8x8xf32, #tpu.memory_space<vmem>>, %arg5: memref<1x8xf32, #tpu.memory_space<vmem>>, %arg6: memref<8x16xf32, #tpu.memory_space<vmem>>, %arg7: memref<1x16xf32, #tpu.memory_space<vmem>>, %arg8: memref<1x8x256xf32, #tpu.memory_space<vmem>>, %arg9: memref<1x8x32xf32, #tpu.memory_space<vmem>>) attributes {dimension_semantics = [#tpu.dimension_semantics<parallel>], iteration_bounds = array<i64: 2>, scalar_prefetch = 0 : i64, scratch_operands = 0 : i64, tpu.core_type = #tpu.core_type<tc>, window_params = [{transform_indices = @transform_0, window_bounds = array<i64: 1, 8, 256>}, {transform_indices = @transform_1, window_bounds = array<i64: 1, 8, 32>}, {pipeline_mode = #tpu.pipeline_mode<synchronous>, transform_indices = @transform_2, window_bounds = array<i64: 8, 8>}, {pipeline_mode = #tpu.pipeline_mode<synchronous>, transform_indices = @transform_3, window_bounds = array<i64: 8, 8>}, {pipeline_mode = #tpu.pipeline_mode<synchronous>, transform_indices = @transform_4, window_bounds = array<i64: 1, 8>}, {pipeline_mode = #tpu.pipeline_mode<synchronous>, transform_indices = @transform_5, window_bounds = array<i64: 8, 16>}, {pipeline_mode = #tpu.pipeline_mode<synchronous>, transform_indices = @transform_6, window_bounds = array<i64: 1, 16>}, {transform_indices = @transform_7, window_bounds = array<i64: 1, 8, 256>}, {transform_indices = @transform_8, window_bounds = array<i64: 1, 8, 32>}]} {
    %c0 = arith.constant 0 : index
    %c0_0 = arith.constant 0 : index
    %c0_1 = arith.constant 0 : index
    %0 = vector.load %arg1[%c0, %c0_0, %c0_1] : memref<1x8x256xf32, #tpu.memory_space<vmem>>, vector<1x8x256xf32>
    %cst = arith.constant dense<0.000000e+00> : vector<1x8xf32>
    %1 = vector.multi_reduction <add>, %0, %cst [2] : vector<1x8x256xf32> to vector<1x8xf32>
    %cst_2 = arith.constant 3.906250e-03 : f32
    %2 = vector.broadcast %cst_2 : f32 to vector<1x8xf32>
    %3 = arith.mulf %1, %2 : vector<1x8xf32>
    %c0_3 = arith.constant 0 : index
    %c0_4 = arith.constant 0 : index
    %c0_5 = arith.constant 0 : index
    %4 = vector.load %arg2[%c0_3, %c0_4, %c0_5] : memref<1x8x32xf32, #tpu.memory_space<vmem>>, vector<1x8x32xf32>
    %cst_6 = arith.constant dense<0.000000e+00> : vector<1x8xf32>
    %5 = vector.multi_reduction <add>, %4, %cst_6 [2] : vector<1x8x32xf32> to vector<1x8xf32>
    %cst_7 = arith.constant 3.125000e-02 : f32
    %6 = vector.broadcast %cst_7 : f32 to vector<1x8xf32>
    %7 = arith.mulf %5, %6 : vector<1x8xf32>
    %c0_8 = arith.constant 0 : index
    %c0_9 = arith.constant 0 : index
    %8 = vector.load %arg3[%c0_8, %c0_9] : memref<8x8xf32, #tpu.memory_space<vmem>>, vector<8x8xf32>
    %cst_10 = arith.constant dense<0.000000e+00> : vector<1x8xf32>
    %9 = tpu.matmul %3, %8, %cst_10 {dimension_numbers = #tpu.dot_dimension_numbers<[1], [0], [0], [1], [0, 0, 1, 1], [], []>} : vector<1x8xf32>, vector<8x8xf32>, vector<1x8xf32> -> vector<1x8xf32>
    %c0_11 = arith.constant 0 : index
    %c0_12 = arith.constant 0 : index
    %10 = vector.load %arg4[%c0_11, %c0_12] : memref<8x8xf32, #tpu.memory_space<vmem>>, vector<8x8xf32>
    %cst_13 = arith.constant dense<0.000000e+00> : vector<1x8xf32>
    %11 = tpu.matmul %7, %10, %cst_13 {dimension_numbers = #tpu.dot_dimension_numbers<[1], [0], [0], [1], [0, 0, 1, 1], [], []>} : vector<1x8xf32>, vector<8x8xf32>, vector<1x8xf32> -> vector<1x8xf32>
    %12 = arith.addf %9, %11 : vector<1x8xf32>
    %c0_14 = arith.constant 0 : index
    %c0_15 = arith.constant 0 : index
    %13 = vector.load %arg5[%c0_14, %c0_15] : memref<1x8xf32, #tpu.memory_space<vmem>>, vector<1x8xf32>
    %14 = arith.addf %12, %13 : vector<1x8xf32>
    %cst_16 = arith.constant 0.000000e+00 : f32
    %15 = vector.broadcast %cst_16 : f32 to vector<1x8xf32>
    %16 = arith.maximumf %14, %15 : vector<1x8xf32>
    %c0_17 = arith.constant 0 : index
    %c0_18 = arith.constant 0 : index
    %17 = vector.load %arg6[%c0_17, %c0_18] : memref<8x16xf32, #tpu.memory_space<vmem>>, vector<8x16xf32>
    %cst_19 = arith.constant dense<0.000000e+00> : vector<1x16xf32>
    %18 = tpu.matmul %16, %17, %cst_19 {dimension_numbers = #tpu.dot_dimension_numbers<[1], [0], [0], [1], [0, 0, 1, 1], [], []>} : vector<1x8xf32>, vector<8x16xf32>, vector<1x16xf32> -> vector<1x16xf32>
    %c0_20 = arith.constant 0 : index
    %c0_21 = arith.constant 0 : index
    %19 = vector.load %arg7[%c0_20, %c0_21] : memref<1x16xf32, #tpu.memory_space<vmem>>, vector<1x16xf32>
    %20 = arith.addf %18, %19 : vector<1x16xf32>
    %21 = arith.negf %20 : vector<1x16xf32>
    %22 = math.exp %21 : vector<1x16xf32>
    %cst_22 = arith.constant 1.000000e+00 : f32
    %23 = vector.broadcast %cst_22 : f32 to vector<1x16xf32>
    %24 = arith.addf %23, %22 : vector<1x16xf32>
    %25 = arith.divf %23, %24 : vector<1x16xf32>
    %26 = vector.extract_strided_slice %25 {offsets = [0, 0], sizes = [1, 8], strides = [1, 1]} : vector<1x16xf32> to vector<1x8xf32>
    %27 = vector.extract_strided_slice %25 {offsets = [0, 8], sizes = [1, 8], strides = [1, 1]} : vector<1x16xf32> to vector<1x8xf32>
    %c0_23 = arith.constant 0 : index
    %c0_24 = arith.constant 0 : index
    %c0_25 = arith.constant 0 : index
    %28 = vector.load %arg1[%c0_23, %c0_24, %c0_25] : memref<1x8x256xf32, #tpu.memory_space<vmem>>, vector<1x8x256xf32>
    %29 = vector.shape_cast %26 : vector<1x8xf32> to vector<1x8x1xf32>
    %30 = vector.broadcast %29 : vector<1x8x1xf32> to vector<1x8x256xf32>
    %31 = arith.mulf %28, %30 : vector<1x8x256xf32>
    %c0_26 = arith.constant 0 : index
    %c0_27 = arith.constant 0 : index
    %c0_28 = arith.constant 0 : index
    %32 = vector.load %arg8[%c0_26, %c0_27, %c0_28] : memref<1x8x256xf32, #tpu.memory_space<vmem>>, vector<1x8x256xf32>
    tpu.vector_store %arg8[%c0_26, %c0_27, %c0_28], %31 {strides = array<i32>} : memref<1x8x256xf32, #tpu.memory_space<vmem>>, vector<1x8x256xf32>,
    %c0_29 = arith.constant 0 : index
    %c0_30 = arith.constant 0 : index
    %c0_31 = arith.constant 0 : index
    %33 = vector.load %arg2[%c0_29, %c0_30, %c0_31] : memref<1x8x32xf32, #tpu.memory_space<vmem>>, vector<1x8x32xf32>
    %34 = vector.shape_cast %27 : vector<1x8xf32> to vector<1x8x1xf32>
    %35 = vector.broadcast %34 : vector<1x8x1xf32> to vector<1x8x32xf32>
    %36 = arith.mulf %33, %35 : vector<1x8x32xf32>
    %c0_32 = arith.constant 0 : index
    %c0_33 = arith.constant 0 : index
    %c0_34 = arith.constant 0 : index
    %37 = vector.load %arg9[%c0_32, %c0_33, %c0_34] : memref<1x8x32xf32, #tpu.memory_space<vmem>>, vector<1x8x32xf32>
    tpu.vector_store %arg9[%c0_32, %c0_33, %c0_34], %36 {strides = array<i32>} : memref<1x8x32xf32, #tpu.memory_space<vmem>>, vector<1x8x32xf32>,
    return
  }
  func.func @transform_0(%arg0: i32) -> (i32, i32, i32) {
    %c0_i32 = arith.constant 0 : i32
    %c0_i32_0 = arith.constant 0 : i32
    %c0_i32_1 = arith.constant 0 : i32
    return %arg0, %c0_i32, %c0_i32_0 : i32, i32, i32
  }
  func.func @transform_1(%arg0: i32) -> (i32, i32, i32) {
    %c0_i32 = arith.constant 0 : i32
    %c0_i32_0 = arith.constant 0 : i32
    %c0_i32_1 = arith.constant 0 : i32
    return %arg0, %c0_i32, %c0_i32_0 : i32, i32, i32
  }
  func.func @transform_2(%arg0: i32) -> (i32, i32) {
    %c0_i32 = arith.constant 0 : i32
    %c0_i32_0 = arith.constant 0 : i32
    %c0_i32_1 = arith.constant 0 : i32
    return %c0_i32, %c0_i32_0 : i32, i32
  }
  func.func @transform_3(%arg0: i32) -> (i32, i32) {
    %c0_i32 = arith.constant 0 : i32
    %c0_i32_0 = arith.constant 0 : i32
    %c0_i32_1 = arith.constant 0 : i32
    return %c0_i32, %c0_i32_0 : i32, i32
  }
  func.func @transform_4(%arg0: i32) -> (i32, i32) {
    %c0_i32 = arith.constant 0 : i32
    %c0_i32_0 = arith.constant 0 : i32
    %c0_i32_1 = arith.constant 0 : i32
    return %c0_i32, %c0_i32_0 : i32, i32
  }
  func.func @transform_5(%arg0: i32) -> (i32, i32) {
    %c0_i32 = arith.constant 0 : i32
    %c0_i32_0 = arith.constant 0 : i32
    %c0_i32_1 = arith.constant 0 : i32
    return %c0_i32, %c0_i32_0 : i32, i32
  }
  func.func @transform_6(%arg0: i32) -> (i32, i32) {
    %c0_i32 = arith.constant 0 : i32
    %c0_i32_0 = arith.constant 0 : i32
    %c0_i32_1 = arith.constant 0 : i32
    return %c0_i32, %c0_i32_0 : i32, i32
  }
  func.func @transform_7(%arg0: i32) -> (i32, i32, i32) {
    %c0_i32 = arith.constant 0 : i32
    %c0_i32_0 = arith.constant 0 : i32
    %c0_i32_1 = arith.constant 0 : i32
    return %arg0, %c0_i32, %c0_i32_0 : i32, i32, i32
  }
  func.func @transform_8(%arg0: i32) -> (i32, i32, i32) {
    %c0_i32 = arith.constant 0 : i32
    %c0_i32_0 = arith.constant 0 : i32
    %c0_i32_1 = arith.constant 0 : i32
    return %arg0, %c0_i32, %c0_i32_0 : i32, i32, i32
  }
}

</mosaic_0001>

<llo_original>
// kernel: mmtm_forward.1
$region0: #{mmtm_forward.1}
  #allocation0 [shape = 'u32[]', space=smem, size = 0x4, offset = 0x4, fixed_abs, tag = 'smem constant byte address 0x4 - core index']
  #allocation1 [shape = 'u32[144,128]{1,0:T(1,128)}', space=vmem, size = 0x12000, scoped, tag = 'internal scratch']
  %s0 = inlined_call_operand.vmem [shape: f32[2,8,256], index: 0, kind: input, shape index: {}]
  %s1 = inlined_call_operand.vmem [shape: f32[2,8,32], index: 1, kind: input, shape index: {}]
  %s2 = inlined_call_operand.vmem [shape: f32[8,8], index: 2, kind: input, shape index: {}]
  %s3 = inlined_call_operand.vmem [shape: f32[8,8], index: 3, kind: input, shape index: {}]
  %s4 = inlined_call_operand.vmem [shape: f32[1,8], index: 4, kind: input, shape index: {}]
  %s5 = inlined_call_operand.vmem [shape: f32[8,16], index: 5, kind: input, shape index: {}]
  %s6 = inlined_call_operand.vmem [shape: f32[1,16], index: 6, kind: input, shape index: {}]
  %s7 = inlined_call_operand.vmem [shape: f32[2,8,256], index: 7, kind: output, shape index: {0}]
  %s8 = inlined_call_operand.hbm [shape: f32[2,8,32], index: 8, kind: output, shape index: {1}]
  %9 = xla_tuple %s7, %s8
  %s10 = sld [smem:[#allocation0]]
  $region69: #{mmtm_forward.1} parent=0
    _
  %s12 = ssub.s32 1, %s10
  %s13 = scalar_select 0, %s12, %s10
  $region1: #{mmtm_forward.1} parent=0
    #allocation2 [shape = 'u8[8192]{0}', space=vmem, size = 0x2000, scoped, tag = 'output window, operand 1']
    #allocation3 [shape = 's32[2]{0}', space=sflag, size = 0x8, scoped, tag = 'scoped memory for mmtm_forward.1']
    %14 = vsyncpa [#allocation3], 0
    %s15 = scalar_lea.sflag [#allocation3], 1
    %16 = vsyncpa %s15, 0
    loop: start=0, step=1, limit=4
    $region2: #{mmtm_forward.1} parent=1 // loop_pre_header
      _
    $region3: #{mmtm_forward.1} parent=1 // loop_header
      %s18 = sphi 0, %s22
      %p19 = scmp.ge.s32.totalorder %s18, 4
      %s28 = sphi 0, %s30
      %s31 = sphi 0, %s28
      %s32 = sphi 0, %s31
      %s48 = sphi 0, %s32
      %s54 = sphi 0, %s56
      %s57 = sphi 0, %s54
      %s58 = sphi 0, %s57
      %s74 = sphi 0, %s58
      %s78 = sphi 0, %s78
      %s80 = sphi 0, %s78
      %s81 = sphi 0, %s80
      %s95 = sphi 0, %s81
      %s99 = sphi 0, %s99
      %s101 = sphi 0, %s99
      %s102 = sphi 0, %s101
      %s116 = sphi 0, %s102
      %s120 = sphi 0, %s120
      %s122 = sphi 0, %s120
      %s123 = sphi 0, %s122
      %s137 = sphi 0, %s123
      %s141 = sphi 0, %s141
      %s143 = sphi 0, %s141
      %s144 = sphi 0, %s143
      %s158 = sphi 0, %s144
      %s162 = sphi 0, %s162
      %s164 = sphi 0, %s162
      %s165 = sphi 0, %s164
      %s179 = sphi 0, %s165
      %s185 = sphi 0, %s187
      %s188 = sphi 0, %s185
      %s189 = sphi 0, %s188
      %s205 = sphi 0, %s189
      %s211 = sphi 0, %s213
      %s214 = sphi 0, %s211
      %s215 = sphi 0, %s214
      %s231 = sphi 0, %s215
    $region4: #{mmtm_forward.1} parent=1 // loop_header_branch
      %21 = sbr.rel (%p19) target = $region8
    $region5: #{mmtm_forward.1} parent=1 // loop_body
      %s23 = ssub.s32 %s18, 1
      %s24 = ssub.s32 %s18, 2
      %s25 = sadd.s32 %s18, 1
      %s26 = ssub.s32 %s18, %s25
      %p27 = scmp.eq.s32.totalorder %s26, 0
      %s29 = sadd.s32 %s28, 1
      %s30 = scalar_select %p27, %s28, %s29
      %p33 = pneg %p27
      %p34 = scmp.eq.s32.totalorder %s18, 1
      %p35 = por %p33, %p34
      %p36 = scmp.ne.s32.totalorder %s28, %s31
      %p37 = scmp.eq.s32.totalorder %s18, 0
      %p38 = por %p36, %p37
      %p39 = scmp.ne.s32.totalorder %s28, %s31
      %p40 = scmp.eq.s32.totalorder %s23, 1
      %p41 = por %p39, %p40
      %p42 = scmp.ne.s32.totalorder %s31, %s32
      %p43 = scmp.eq.s32.totalorder %s23, 0
      %p44 = por %p42, %p43
      %p45 = scmp.ne.s32.totalorder %s31, %s32
      %p46 = scmp.eq.s32.totalorder %s24, 1
      %p47 = por %p45, %p46
      %p49 = scmp.ne.s32.totalorder %s32, %s48
      %p50 = scmp.eq.s32.totalorder %s24, 0
      %p51 = por %p49, %p50
      %s52 = ssub.s32 %s18, %s25
      %p53 = scmp.eq.s32.totalorder %s52, 0
      %s55 = sadd.s32 %s54, 1
      %s56 = scalar_select %p53, %s54, %s55
      %p59 = pneg %p53
      %p60 = scmp.eq.s32.totalorder %s18, 1
      %p61 = por %p59, %p60
      %p62 = scmp.ne.s32.totalorder %s54, %s57
      %p63 = scmp.eq.s32.totalorder %s18, 0
      %p64 = por %p62, %p63
      %p65 = scmp.ne.s32.totalorder %s54, %s57
      %p66 = scmp.eq.s32.totalorder %s23, 1
      %p67 = por %p65, %p66
      %p68 = scmp.ne.s32.totalorder %s57, %s58
      %p69 = scmp.eq.s32.totalorder %s23, 0
      %p70 = por %p68, %p69
      %p71 = scmp.ne.s32.totalorder %s57, %s58
      %p72 = scmp.eq.s32.totalorder %s24, 1
      %p73 = por %p71, %p72
      %p75 = scmp.ne.s32.totalorder %s58, %s74
      %p76 = scmp.eq.s32.totalorder %s24, 0
      %p77 = por %p75, %p76
      %s79 = sadd.s32 %s78, 1
      %p82 = scmp.eq.s32.totalorder %s18, 1
      %p83 = scmp.ne.s32.totalorder %s78, %s80
      %p84 = scmp.eq.s32.totalorder %s18, 0
      %p85 = por %p83, %p84
      %p86 = scmp.ne.s32.totalorder %s78, %s80
      %p87 = scmp.eq.s32.totalorder %s23, 1
      %p88 = por %p86, %p87
      %p89 = scmp.ne.s32.totalorder %s80, %s81
      %p90 = scmp.eq.s32.totalorder %s23, 0
      %p91 = por %p89, %p90
      %p92 = scmp.ne.s32.totalorder %s80, %s81
      %p93 = scmp.eq.s32.totalorder %s24, 1
      %p94 = por %p92, %p93
      %p96 = scmp.ne.s32.totalorder %s81, %s95
      %p97 = scmp.eq.s32.totalorder %s24, 0
      %p98 = por %p96, %p97
      %s100 = sadd.s32 %s99, 1
      %p103 = scmp.eq.s32.totalorder %s18, 1
      %p104 = scmp.ne.s32.totalorder %s99, %s101
      %p105 = scmp.eq.s32.totalorder %s18, 0
      %p106 = por %p104, %p105
      %p107 = scmp.ne.s32.totalorder %s99, %s101
      %p108 = scmp.eq.s32.totalorder %s23, 1
      %p109 = por %p107, %p108
      %p110 = scmp.ne.s32.totalorder %s101, %s102
      %p111 = scmp.eq.s32.totalorder %s23, 0
      %p112 = por %p110, %p111
      %p113 = scmp.ne.s32.totalorder %s101, %s102
      %p114 = scmp.eq.s32.totalorder %s24, 1
      %p115 = por %p113, %p114
      %p117 = scmp.ne.s32.totalorder %s102, %s116
      %p118 = scmp.eq.s32.totalorder %s24, 0
      %p119 = por %p117, %p118
      %s121 = sadd.s32 %s120, 1
      %p124 = scmp.eq.s32.totalorder %s18, 1
      %p125 = scmp.ne.s32.totalorder %s120, %s122
      %p126 = scmp.eq.s32.totalorder %s18, 0
      %p127 = por %p125, %p126
      %p128 = scmp.ne.s32.totalorder %s120, %s122
      %p129 = scmp.eq.s32.totalorder %s23, 1
      %p130 = por %p128, %p129
      %p131 = scmp.ne.s32.totalorder %s122, %s123
      %p132 = scmp.eq.s32.totalorder %s23, 0
      %p133 = por %p131, %p132
      %p134 = scmp.ne.s32.totalorder %s122, %s123
      %p135 = scmp.eq.s32.totalorder %s24, 1
      %p136 = por %p134, %p135
      %p138 = scmp.ne.s32.totalorder %s123, %s137
      %p139 = scmp.eq.s32.totalorder %s24, 0
      %p140 = por %p138, %p139
      %s142 = sadd.s32 %s141, 1
      %p145 = scmp.eq.s32.totalorder %s18, 1
      %p146 = scmp.ne.s32.totalorder %s141, %s143
      %p147 = scmp.eq.s32.totalorder %s18, 0
      %p148 = por %p146, %p147
      %p149 = scmp.ne.s32.totalorder %s141, %s143
      %p150 = scmp.eq.s32.totalorder %s23, 1
      %p151 = por %p149, %p150
      %p152 = scmp.ne.s32.totalorder %s143, %s144
      %p153 = scmp.eq.s32.totalorder %s23, 0
      %p154 = por %p152, %p153
      %p155 = scmp.ne.s32.totalorder %s143, %s144
      %p156 = scmp.eq.s32.totalorder %s24, 1
      %p157 = por %p155, %p156
      %p159 = scmp.ne.s32.totalorder %s144, %s158
      %p160 = scmp.eq.s32.totalorder %s24, 0
      %p161 = por %p159, %p160
      %s163 = sadd.s32 %s162, 1
      %p166 = scmp.eq.s32.totalorder %s18, 1
      %p167 = scmp.ne.s32.totalorder %s162, %s164
      %p168 = scmp.eq.s32.totalorder %s18, 0
      %p169 = por %p167, %p168
      %p170 = scmp.ne.s32.totalorder %s162, %s164
      %p171 = scmp.eq.s32.totalorder %s23, 1
      %p172 = por %p170, %p171
      %p173 = scmp.ne.s32.totalorder %s164, %s165
      %p174 = scmp.eq.s32.totalorder %s23, 0
      %p175 = por %p173, %p174
      %p176 = scmp.ne.s32.totalorder %s164, %s165
      %p177 = scmp.eq.s32.totalorder %s24, 1
      %p178 = por %p176, %p177
      %p180 = scmp.ne.s32.totalorder %s165, %s179
      %p181 = scmp.eq.s32.totalorder %s24, 0
      %p182 = por %p180, %p181
      %s183 = ssub.s32 %s18, %s25
      %p184 = scmp.eq.s32.totalorder %s183, 0
      %s186 = sadd.s32 %s185, 1
      %s187 = scalar_select %p184, %s185, %s186
      %p190 = pneg %p184
      %p191 = scmp.eq.s32.totalorder %s18, 1
      %p192 = por %p190, %p191
      %p193 = scmp.ne.s32.totalorder %s185, %s188
      %p194 = scmp.eq.s32.totalorder %s18, 0
      %p195 = por %p193, %p194
      %p196 = scmp.ne.s32.totalorder %s185, %s188
      %p197 = scmp.eq.s32.totalorder %s23, 1
      %p198 = por %p196, %p197
      %p199 = scmp.ne.s32.totalorder %s188, %s189
      %p200 = scmp.eq.s32.totalorder %s23, 0
      %p201 = por %p199, %p200
      %p202 = scmp.ne.s32.totalorder %s188, %s189
      %p203 = scmp.eq.s32.totalorder %s24, 1
      %p204 = por %p202, %p203
      %p206 = scmp.ne.s32.totalorder %s189, %s205
      %p207 = scmp.eq.s32.totalorder %s24, 0
      %p208 = por %p206, %p207
      %s209 = ssub.s32 %s18, %s25
      %p210 = scmp.eq.s32.totalorder %s209, 0
      %s212 = sadd.s32 %s211, 1
      %s213 = scalar_select %p210, %s211, %s212
      %p216 = pneg %p210
      %p217 = scmp.eq.s32.totalorder %s18, 1
      %p218 = por %p216, %p217
      %p219 = scmp.ne.s32.totalorder %s211, %s214
      %p220 = scmp.eq.s32.totalorder %s18, 0
      %p221 = por %p219, %p220
      %p222 = scmp.ne.s32.totalorder %s211, %s214
      %p223 = scmp.eq.s32.totalorder %s23, 1
      %p224 = por %p222, %p223
      %p225 = scmp.ne.s32.totalorder %s214, %s215
      %p226 = scmp.eq.s32.totalorder %s23, 0
      %p227 = por %p225, %p226
      %p228 = scmp.ne.s32.totalorder %s214, %s215
      %p229 = scmp.eq.s32.totalorder %s24, 1
      %p230 = por %p228, %p229
      %p232 = scmp.ne.s32.totalorder %s215, %s231
      %p233 = scmp.eq.s32.totalorder %s24, 0
      %p234 = por %p232, %p233
      %p235 = scmp.le.s32.totalorder 1, %s18
      %p236 = scmp.lt.s32.totalorder %s18, 3
      %p237 = pnand %p235, %p236
      %p238 = pneg %p237
      // Predicated region
      $region9: #{mmtm_forward.1} parent=5 // pred_check
        _
      $region10: #{mmtm_forward.1} parent=5 // pred_check_branch
        %240 = sbr.rel (%p237) target = $region12
      $region11: #{mmtm_forward.1} parent=5 // pred_region
        %s241 = ssub.s32 %s18, 1
        // Predicated region
        $region13: #{mmtm_forward.1} parent=11 // pred_check
          %p242 = pneg %p91
        $region14: #{mmtm_forward.1} parent=11 // pred_check_branch
          %244 = sbr.rel (%p242) target = $region16
        $region15: #{mmtm_forward.1} parent=11 // pred_region
          _
        $region16: #{mmtm_forward.1} parent=11 // pred_fallthru
          _
        // Predicated region
        $region17: #{mmtm_forward.1} parent=11 // pred_check
          %p245 = pneg %p112
        $region18: #{mmtm_forward.1} parent=11 // pred_check_branch
          %247 = sbr.rel (%p245) target = $region20
        $region19: #{mmtm_forward.1} parent=11 // pred_region
          _
        $region20: #{mmtm_forward.1} parent=11 // pred_fallthru
          _
        // Predicated region
        $region21: #{mmtm_forward.1} parent=11 // pred_check
          %p248 = pneg %p133
        $region22: #{mmtm_forward.1} parent=11 // pred_check_branch
          %250 = sbr.rel (%p248) target = $region24
        $region23: #{mmtm_forward.1} parent=11 // pred_region
          _
        $region24: #{mmtm_forward.1} parent=11 // pred_fallthru
          _
        // Predicated region
        $region25: #{mmtm_forward.1} parent=11 // pred_check
          %p251 = pneg %p154
        $region26: #{mmtm_forward.1} parent=11 // pred_check_branch
          %253 = sbr.rel (%p251) target = $region28
        $region27: #{mmtm_forward.1} parent=11 // pred_region
          _
        $region28: #{mmtm_forward.1} parent=11 // pred_fallthru
          _
        // Predicated region
        $region29: #{mmtm_forward.1} parent=11 // pred_check
          %p254 = pneg %p175
        $region30: #{mmtm_forward.1} parent=11 // pred_check_branch
          %256 = sbr.rel (%p254) target = $region32
        $region31: #{mmtm_forward.1} parent=11 // pred_region
          _
        $region32: #{mmtm_forward.1} parent=11 // pred_fallthru
          _
      $region12: #{mmtm_forward.1} parent=5 // pred_fallthru
        _
      %p257 = scmp.lt.s32.totalorder %s18, 2
      // Predicated region
      $region33: #{mmtm_forward.1} parent=5 // pred_check
        %p258 = pneg %p257
      $region34: #{mmtm_forward.1} parent=5 // pred_check_branch
        %260 = sbr.rel (%p258) target = $region36
      $region35: #{mmtm_forward.1} parent=5 // pred_region
        // Predicated region
        $region37: #{mmtm_forward.1} parent=35 // pred_check
          %p261 = pneg %p38
        $region38: #{mmtm_forward.1} parent=35 // pred_check_branch
          %263 = sbr.rel (%p261) target = $region40
        $region39: #{mmtm_forward.1} parent=35 // pred_region
          %p264 = scmp.lt.s32.totalorder %s18, 1
          %s265 = scalar_select %p264, %s18, 1
          %s266 = smul.addr %s265, 2
          %s267 = smul.addr %s266, 8
          %s268 = scalar_lea.vmem %s0, %s267
        $region40: #{mmtm_forward.1} parent=35 // pred_fallthru
          _
        // Predicated region
        $region41: #{mmtm_forward.1} parent=35 // pred_check
          %p269 = pneg %p64
        $region42: #{mmtm_forward.1} parent=35 // pred_check_branch
          %271 = sbr.rel (%p269) target = $region44
        $region43: #{mmtm_forward.1} parent=35 // pred_region
          %p272 = scmp.lt.s32.totalorder %s18, 1
          %s273 = scalar_select %p272, %s18, 1
          %s274 = smul.addr %s273, 8
          %s275 = scalar_lea.vmem %s1, %s274
        $region44: #{mmtm_forward.1} parent=35 // pred_fallthru
          _
      $region36: #{mmtm_forward.1} parent=5 // pred_fallthru
        _
      %p276 = scmp.le.s32.totalorder 1, %s18
      %p277 = scmp.lt.s32.totalorder %s18, 3
      %p278 = pnand %p276, %p277
      %p279 = pneg %p278
      // Predicated region
      $region45: #{mmtm_forward.1} parent=5 // pred_check
        _
      $region46: #{mmtm_forward.1} parent=5 // pred_check_branch
        %281 = sbr.rel (%p278) target = $region48
      $region47: #{mmtm_forward.1} parent=5 // pred_region
        %s282 = ssub.s32 %s18, 1
        %p283 = scmp.lt.s32.totalorder %s23, 1
        %s284 = scalar_select %p283, %s23, 1
        %s285 = smul.addr %s284, 2
        %s286 = smul.addr %s285, 8
        %s287 = scalar_lea.vmem %s0, %s286
        %p288 = pneg %p44
        %p289 = pneg %p41
        %p290 = scmp.lt.s32.totalorder %s23, 1
        %s291 = scalar_select %p290, %s23, 1
        %s292 = smul.addr %s291, 8
        %s293 = scalar_lea.vmem %s1, %s292
        %p294 = pneg %p70
        %p295 = pneg %p67
        %p296 = pneg %p91
        %p297 = pneg %p88
        %p298 = pneg %p112
        %p299 = pneg %p109
        %p300 = pneg %p133
        %p301 = pneg %p130
        %p302 = pneg %p154
        %p303 = pneg %p151
        %p304 = pneg %p175
        %p305 = pneg %p172
        %p306 = pneg %p201
        %p307 = pneg %p198
        %p308 = scmp.lt.s32.totalorder %s23, 1
        %s309 = scalar_select %p308, %s23, 1
        %s310 = smul.addr %s309, 2
        %s311 = smul.addr %s310, 8
        %s312 = scalar_lea.vmem %s7, %s311
        %p313 = pneg %p227
        %p314 = pneg %p224
        %s315 = sand.u32 %s214, 1
        %s316 = scalar_lea.sflag [#allocation3], %s315
        %s317 = sand.u32 %s214, 1
        %s318 = smul.addr %s317, 8
        %s319 = scalar_lea.vmem [#allocation2], %s318
        %p320 = scmp.lt.s32.totalorder %s23, 1
        %s321 = scalar_select %p320, %s23, 1
        %s322 = smul.addr %s321, 2
        %s323 = smul.addr %s322, 8
        %s324 = scalar_lea.vmem %s0, %s323
        %p325 = scmp.lt.s32.totalorder %s23, 1
        %s326 = scalar_select %p325, %s23, 1
        %s327 = smul.addr %s326, 8
        %s328 = scalar_lea.vmem %s1, %s327
        %p329 = scmp.lt.s32.totalorder %s23, 1
        %s330 = scalar_select %p329, %s23, 1
        %s331 = smul.addr %s330, 2
        %s332 = smul.addr %s331, 8
        %s333 = scalar_lea.vmem %s7, %s332
        %v334 = vld [vmem:[%s324] sm:$0xff]
        %v335 = vld [vmem:[%s324 + $0x8] sm:$0xff]
        %v336 = vadd.f32 %v334, %v335
        %337 = vadd.xlane.f32.xlu0 %v336
        %v338 = vpop.xlane.xlu0 %337
        %v339 = vmul.f32 %v338, 0.00390625
        %v340 = vld [vmem:[%s328] sm:$0xff]
        %vm341 = vcmask 261120
        %v342 = vsel %vm341, %v340, 0.0
        %343 = vadd.xlane.f32.xlu0 %v342
        %v344 = vpop.xlane.xlu0 %343
        %v345 = vmul.f32 %v344, 0.03125
        %v346 = vld [vmem:[%s2] sm:$0xff]
        %v347 = vld [vmem:[%s3] sm:$0xff]
        %v349 = vlaneseq
        %v350 = vand.u32 %v349, 127
        %v351 = vlaneseq
        %v352 = vshrl.u32 %v351, 7
        %v353 = vsub.s32 %v350, %v352
        %v354 = vrot.slane %v345, %v353
        %vm355 = vcmask 64512
        %v356 = vsel %vm355, %v354, 0
        %358 = vmatprep.subr.mxu0 0.0
        %359 = vmatpush1.msra.mxu0 %v347
        %360 = vmatprep.subr.mxu0 0.0
        %361 = vmatpush1.msra.mxu0 0.0
        %362 = vmatprep.subr.mxu0 0.0
        %363 = vmatpush1.msra.mxu0 0.0
        %364 = vmatprep.subr.mxu0 0.0
        %365 = vmatpush1.msra.mxu0 0.0
        %366 = vmatprep.subr.mxu0 0.0
        %367 = vmatpush1.msra.mxu0 0.0
        %368 = vmatprep.subr.mxu0 0.0
        %369 = vmatpush1.msra.mxu0 0.0
        %370 = vmatprep.subr.mxu0 0.0
        %371 = vmatpush1.msra.mxu0 0.0
        %372 = vmatprep.subr.mxu0 0.0
        %373 = vmatpush1.msra.mxu0 0.0
        %374 = vmatprep.subr.mxu0 0.0
        %375 = vmatpush1.msra.mxu0 0.0
        %376 = vmatprep.subr.mxu0 0.0
        %377 = vmatpush1.msra.mxu0 0.0
        %378 = vmatprep.subr.mxu0 0.0
        %379 = vmatpush1.msra.mxu0 0.0
        %380 = vmatprep.subr.mxu0 0.0
        %381 = vmatpush1.msra.mxu0 0.0
        %382 = vmatprep.subr.mxu0 0.0
        %383 = vmatpush1.msra.mxu0 0.0
        %384 = vmatprep.subr.mxu0 0.0
        %385 = vmatpush1.msra.mxu0 0.0
        %386 = vmatprep.subr.mxu0 0.0
        %387 = vmatpush1.msra.mxu0 0.0
        %388 = vmatprep.subr.mxu0 0.0
        %389 = vmatpush1.msra.mxu0 0.0
        %390 = vmatprep.subr.mxu0 0.0
        %391 = vmatpush1.msra.mxu0 0.0
        %392 = vmatprep.subr.mxu0 0.0
        %393 = vmatpush1.msra.mxu0 0.0
        %394 = vmatprep.subr.mxu0 0.0
        %395 = vmatpush1.msra.mxu0 0.0
        %396 = vmatprep.subr.mxu0 0.0
        %397 = vmatpush1.msra.mxu0 0.0
        %398 = vmatprep.subr.mxu0 0.0
        %399 = vmatpush1.msra.mxu0 0.0
        %400 = vmatprep.subr.mxu0 0.0
        %401 = vmatpush1.msra.mxu0 0.0
        %402 = vmatprep.subr.mxu0 0.0
        %403 = vmatpush1.msra.mxu0 0.0
        %404 = vmatprep.subr.mxu0 0.0
        %405 = vmatpush1.msra.mxu0 0.0
        %406 = vmatprep.subr.mxu0 0.0
        %407 = vmatpush1.msra.mxu0 0.0
        %408 = vmatprep.subr.mxu0 0.0
        %409 = vmatpush1.msra.mxu0 0.0
        %410 = vmatprep.subr.mxu0 0.0
        %411 = vmatpush1.msra.mxu0 0.0
        %412 = vmatprep.subr.mxu0 0.0
        %413 = vmatpush1.msra.mxu0 0.0
        %414 = vmatprep.subr.mxu0 0.0
        %415 = vmatpush1.msra.mxu0 0.0
        %416 = vmatprep.subr.mxu0 0.0
        %417 = vmatpush1.msra.mxu0 0.0
        %418 = vmatprep.subr.mxu0 0.0
        %419 = vmatpush1.msra.mxu0 0.0
        %420 = vmatprep.subr.mxu0 0.0
        %421 = vmatpush1.msra.mxu0 0.0
        %422 = vmatprep.mubr.f32.mxu0 0.0
        %423 = vmatmul.mubr.f32.gmra.mrb[0].mxu0 %v356
        %v424 = vpop.f32.mrb[0].mxu0
        %v425 = vadd.f32 0.0, %v424
        %v426 = vpop.f32.mrb[0].mxu0
        %427 = vdwg.mxu0
        %v429 = vlaneseq
        %v430 = vshrl.u32 %v429, 7
        %v431 = vsub.s32 %v350, %v430
        %v432 = vrot.slane %v339, %v431
        %v433 = vsel %vm355, %v432, 0
        %435 = vmatprep.subr.mxu0 0.0
        %436 = vmatpush1.msra.mxu0 %v346
        %437 = vmatprep.subr.mxu0 0.0
        %438 = vmatpush1.msra.mxu0 0.0
        %439 = vmatprep.subr.mxu0 0.0
        %440 = vmatpush1.msra.mxu0 0.0
        %441 = vmatprep.subr.mxu0 0.0
        %442 = vmatpush1.msra.mxu0 0.0
        %443 = vmatprep.subr.mxu0 0.0
        %444 = vmatpush1.msra.mxu0 0.0
        %445 = vmatprep.subr.mxu0 0.0
        %446 = vmatpush1.msra.mxu0 0.0
        %447 = vmatprep.subr.mxu0 0.0
        %448 = vmatpush1.msra.mxu0 0.0
        %449 = vmatprep.subr.mxu0 0.0
        %450 = vmatpush1.msra.mxu0 0.0
        %451 = vmatprep.subr.mxu0 0.0
        %452 = vmatpush1.msra.mxu0 0.0
        %453 = vmatprep.subr.mxu0 0.0
        %454 = vmatpush1.msra.mxu0 0.0
        %455 = vmatprep.subr.mxu0 0.0
        %456 = vmatpush1.msra.mxu0 0.0
        %457 = vmatprep.subr.mxu0 0.0
        %458 = vmatpush1.msra.mxu0 0.0
        %459 = vmatprep.subr.mxu0 0.0
        %460 = vmatpush1.msra.mxu0 0.0
        %461 = vmatprep.subr.mxu0 0.0
        %462 = vmatpush1.msra.mxu0 0.0
        %463 = vmatprep.subr.mxu0 0.0
        %464 = vmatpush1.msra.mxu0 0.0
        %465 = vmatprep.subr.mxu0 0.0
        %466 = vmatpush1.msra.mxu0 0.0
        %467 = vmatprep.subr.mxu0 0.0
        %468 = vmatpush1.msra.mxu0 0.0
        %469 = vmatprep.subr.mxu0 0.0
        %470 = vmatpush1.msra.mxu0 0.0
        %471 = vmatprep.subr.mxu0 0.0
        %472 = vmatpush1.msra.mxu0 0.0
        %473 = vmatprep.subr.mxu0 0.0
        %474 = vmatpush1.msra.mxu0 0.0
        %475 = vmatprep.subr.mxu0 0.0
        %476 = vmatpush1.msra.mxu0 0.0
        %477 = vmatprep.subr.mxu0 0.0
        %478 = vmatpush1.msra.mxu0 0.0
        %479 = vmatprep.subr.mxu0 0.0
        %480 = vmatpush1.msra.mxu0 0.0
        %481 = vmatprep.subr.mxu0 0.0
        %482 = vmatpush1.msra.mxu0 0.0
        %483 = vmatprep.subr.mxu0 0.0
        %484 = vmatpush1.msra.mxu0 0.0
        %485 = vmatprep.subr.mxu0 0.0
        %486 = vmatpush1.msra.mxu0 0.0
        %487 = vmatprep.subr.mxu0 0.0
        %488 = vmatpush1.msra.mxu0 0.0
        %489 = vmatprep.subr.mxu0 0.0
        %490 = vmatpush1.msra.mxu0 0.0
        %491 = vmatprep.subr.mxu0 0.0
        %492 = vmatpush1.msra.mxu0 0.0
        %493 = vmatprep.subr.mxu0 0.0
        %494 = vmatpush1.msra.mxu0 0.0
        %495 = vmatprep.subr.mxu0 0.0
        %496 = vmatpush1.msra.mxu0 0.0
        %497 = vmatprep.subr.mxu0 0.0
        %498 = vmatpush1.msra.mxu0 0.0
        %499 = vmatprep.mubr.f32.mxu0 0.0
        %500 = vmatmul.mubr.f32.gmra.mrb[0].mxu0 %v433
        %v501 = vpop.f32.mrb[0].mxu0
        %v502 = vadd.f32 %v425, %v501
        %v503 = vpop.f32.mrb[0].mxu0
        %504 = vdwg.mxu0
        %v505 = vld [vmem:[%s4] sm:$0x1]
        %v506 = vadd.f32 %v502, %v505
        %v507 = vmax.f32 %v506, 0.0
        %v508 = vld [vmem:[%s5] sm:$0xff]
        %v509 = vld [vmem:[%s6] sm:$0x1]
        %v511 = vsel %vm355, %v507, 0
        %513 = vmatprep.subr.mxu0 0.0
        %514 = vmatpush1.msra.mxu0 %v508
        %515 = vmatprep.subr.mxu0 0.0
        %516 = vmatpush1.msra.mxu0 0.0
        %517 = vmatprep.subr.mxu0 0.0
        %518 = vmatpush1.msra.mxu0 0.0
        %519 = vmatprep.subr.mxu0 0.0
        %520 = vmatpush1.msra.mxu0 0.0
        %521 = vmatprep.subr.mxu0 0.0
        %522 = vmatpush1.msra.mxu0 0.0
        %523 = vmatprep.subr.mxu0 0.0
        %524 = vmatpush1.msra.mxu0 0.0
        %525 = vmatprep.subr.mxu0 0.0
        %526 = vmatpush1.msra.mxu0 0.0
        %527 = vmatprep.subr.mxu0 0.0
        %528 = vmatpush1.msra.mxu0 0.0
        %529 = vmatprep.subr.mxu0 0.0
        %530 = vmatpush1.msra.mxu0 0.0
        %531 = vmatprep.subr.mxu0 0.0
        %532 = vmatpush1.msra.mxu0 0.0
        %533 = vmatprep.subr.mxu0 0.0
        %534 = vmatpush1.msra.mxu0 0.0
        %535 = vmatprep.subr.mxu0 0.0
        %536 = vmatpush1.msra.mxu0 0.0
        %537 = vmatprep.subr.mxu0 0.0
        %538 = vmatpush1.msra.mxu0 0.0
        %539 = vmatprep.subr.mxu0 0.0
        %540 = vmatpush1.msra.mxu0 0.0
        %541 = vmatprep.subr.mxu0 0.0
        %542 = vmatpush1.msra.mxu0 0.0
        %543 = vmatprep.subr.mxu0 0.0
        %544 = vmatpush1.msra.mxu0 0.0
        %545 = vmatprep.subr.mxu0 0.0
        %546 = vmatpush1.msra.mxu0 0.0
        %547 = vmatprep.subr.mxu0 0.0
        %548 = vmatpush1.msra.mxu0 0.0
        %549 = vmatprep.subr.mxu0 0.0
        %550 = vmatpush1.msra.mxu0 0.0
        %551 = vmatprep.subr.mxu0 0.0
        %552 = vmatpush1.msra.mxu0 0.0
        %553 = vmatprep.subr.mxu0 0.0
        %554 = vmatpush1.msra.mxu0 0.0
        %555 = vmatprep.subr.mxu0 0.0
        %556 = vmatpush1.msra.mxu0 0.0
        %557 = vmatprep.subr.mxu0 0.0
        %558 = vmatpush1.msra.mxu0 0.0
        %559 = vmatprep.subr.mxu0 0.0
        %560 = vmatpush1.msra.mxu0 0.0
        %561 = vmatprep.subr.mxu0 0.0
        %562 = vmatpush1.msra.mxu0 0.0
        %563 = vmatprep.subr.mxu0 0.0
        %564 = vmatpush1.msra.mxu0 0.0
        %565 = vmatprep.subr.mxu0 0.0
        %566 = vmatpush1.msra.mxu0 0.0
        %567 = vmatprep.subr.mxu0 0.0
        %568 = vmatpush1.msra.mxu0 0.0
        %569 = vmatprep.subr.mxu0 0.0
        %570 = vmatpush1.msra.mxu0 0.0
        %571 = vmatprep.subr.mxu0 0.0
        %572 = vmatpush1.msra.mxu0 0.0
        %573 = vmatprep.subr.mxu0 0.0
        %574 = vmatpush1.msra.mxu0 0.0
        %575 = vmatprep.subr.mxu0 0.0
        %576 = vmatpush1.msra.mxu0 0.0
        %577 = vmatprep.mubr.f32.mxu0 0.0
        %578 = vmatmul.mubr.f32.gmra.mrb[0].mxu0 %v511
        %v579 = vpop.f32.mrb[0].mxu0
        %v580 = vadd.f32 %v509, %v579
        %v581 = vpop.f32.mrb[0].mxu0
        %582 = vdwg.mxu0
        %v583 = vxor.u32 %v580, 2147483648
        %v584 = vmul.f32 %v583, 1.442695
        %v585 = vpow.pop %v584
        %v586 = vadd.f32 %v585, 1.0
        %v587 = vrcp.pop %v586
        %v588 = vmul.f32 1.0, %v587
        %v589 = vlaneseq
        %v590 = vshrl.u32 %v589, 7
        %v591 = vsub.s32 0, %v590
        %v592 = vrot.slane %v588, %v591
        %594 = vbcast.lane.b32.xlu0 %v592, 256
        %v595 = vpop.permute.xlu0 %594
        %v596 = vmul.f32 %v334, %v595
        %v597 = vmul.f32 %v335, %v595
        %598 = vst [vmem:[%s333] sm:$0xff] %v596
        %599 = vst [vmem:[%s333 + $0x8] sm:$0xff] %v597
        %v600 = vld [vmem:[%s328] sm:$0xff]
        %s602 = sor.u32 256, 8
        %603 = vbcast.lane.b32.xlu0 %v592, %s602
        %v604 = vpop.permute.xlu0 %603
        %v605 = vmul.f32 %v600, %v604
        %606 = vst.msk [vmem:[%s319] sm:$0xff] %vm341, %v605
        %p607 = scmp.lt.s32.totalorder %s23, 1
        %s608 = scalar_select %p607, %s23, 1
        %s609 = smul.addr %s608, 2
        %s610 = smul.addr %s609, 8
        %s611 = scalar_lea.vmem %s7, %s610
        %s612 = sand.u32 %s214, 1
        %s613 = scalar_lea.sflag [#allocation3], %s612
        %s614 = sand.u32 %s214, 1
        %s615 = smul.addr %s614, 8
        %s616 = scalar_lea.vmem [#allocation2], %s615
        // Predicated region
        $region49: #{mmtm_forward.1} parent=47 // pred_check
          %p617 = pneg %p198
        $region50: #{mmtm_forward.1} parent=47 // pred_check_branch
          %619 = sbr.rel (%p617) target = $region52
        $region51: #{mmtm_forward.1} parent=47 // pred_region
          _
        $region52: #{mmtm_forward.1} parent=47 // pred_fallthru
          _
        // Predicated region
        $region53: #{mmtm_forward.1} parent=47 // pred_check
          %p620 = pneg %p224
        $region54: #{mmtm_forward.1} parent=47 // pred_check_branch
          %622 = sbr.rel (%p620) target = $region56
        $region55: #{mmtm_forward.1} parent=47 // pred_region
          %s624 = ssub.s32 128, 128
          %625 = vsyncadd %s613, %s624
          %s626 = smul.addr %s23, 128
          %s627 = scalar_lea.hbm %s8, %s626
          %s629 = sshll.u32 %s616, 4
          %s630 = int_to_ptr.vmem [resolvable:$true] %s629
          %632 = dma.vmem_to_hbm [thread:$0]  %s630, 128, %s627, %s613
        $region56: #{mmtm_forward.1} parent=47 // pred_fallthru
          _
      $region48: #{mmtm_forward.1} parent=5 // pred_fallthru
        _
      %p633 = scmp.le.s32.totalorder 2, %s18
      // Predicated region
      $region57: #{mmtm_forward.1} parent=5 // pred_check
        %p634 = pneg %p633
      $region58: #{mmtm_forward.1} parent=5 // pred_check_branch
        %636 = sbr.rel (%p634) target = $region60
      $region59: #{mmtm_forward.1} parent=5 // pred_region
        %s637 = ssub.s32 %s18, 2
        // Predicated region
        $region61: #{mmtm_forward.1} parent=59 // pred_check
          %p638 = pneg %p204
        $region62: #{mmtm_forward.1} parent=59 // pred_check_branch
          %640 = sbr.rel (%p638) target = $region64
        $region63: #{mmtm_forward.1} parent=59 // pred_region
          %p641 = scmp.lt.s32.totalorder %s24, 1
          %s642 = scalar_select %p641, %s24, 1
          %s643 = smul.addr %s642, 2
          %s644 = smul.addr %s643, 8
          %s645 = scalar_lea.vmem %s7, %s644
        $region64: #{mmtm_forward.1} parent=59 // pred_fallthru
          _
        // Predicated region
        $region65: #{mmtm_forward.1} parent=59 // pred_check
          %p646 = pneg %p230
        $region66: #{mmtm_forward.1} parent=59 // pred_check_branch
          %648 = sbr.rel (%p646) target = $region68
        $region67: #{mmtm_forward.1} parent=59 // pred_region
          %s649 = sand.u32 %s215, 1
          %s650 = scalar_lea.sflag [#allocation3], %s649
          %s651 = sand.u32 %s215, 1
          %s652 = smul.addr %s651, 8
          %s653 = scalar_lea.vmem [#allocation2], %s652
          %654 = dma.done %s650, 128
        $region68: #{mmtm_forward.1} parent=59 // pred_fallthru
          _
      $region60: #{mmtm_forward.1} parent=5 // pred_fallthru
        _
    $region6: #{mmtm_forward.1} parent=1 // loop_footer
      %s22 = sadd.s32 1, %s18
    $region7: #{mmtm_forward.1} parent=1 // loop_footer_branch
      %17 = sbr.rel target = $region3
    $region8: #{mmtm_forward.1} parent=1 // loop_exit
      _
    %655 = vsyncpa [#allocation3], 1
    %s656 = scalar_lea.sflag [#allocation3], 1
    %657 = vsyncpa %s656, 1

</llo_original>
